<compile_context>
chip_gen: v7x
topology: tpu7x:2x2x1
jax: 0.10.0
libtpu: 0.0.40
codegen_flags: <defaults>
</compile_context>

<pallas_src>
import functools

import jax
import jax.numpy as jnp
from jax import lax
from jax.experimental import pallas as pl
from jax.experimental.pallas import tpu as pltpu


def _attention_kernel(out_ref, ctx_ref, wt_ref, b_ref, y_ref, attn_ref, *, mxu_dtype):
    # One grid step == TB batch elements.
    o = out_ref[...]                                  # (TB, O, D)
    c = ctx_ref[...]                                  # (TB, I, D)
    TB, O, D = o.shape

    mx = mxu_dtype if mxu_dtype is not None else o.dtype
    o_mx = o.astype(mx)
    c_mx = c.astype(mx)

    # attn scores: einsum('bod,bid->boi') — contract last dims, batch dim 0.
    # No .T: both operands feed the MXU in their natural (row, lane) layout.
    scores = lax.dot_general(
        o_mx, c_mx,
        dimension_numbers=(((2,), (2,)), ((0,), (0,))),
        preferred_element_type=jnp.float32)           # (TB, O, I) f32

    # softmax over the O axis (axis=1) == torch F.softmax(attn, dim=1) on (B, O, I)
    m = jnp.max(scores, axis=1, keepdims=True)
    e = jnp.exp(scores - m)
    s = jnp.sum(e, axis=1, keepdims=True)
    # EUP approximate reciprocal + one Newton refinement -> full f32 precision,
    # keeps the divide off the VALU slots.
    r = pl.reciprocal(s, approx=True)
    r = r * (2.0 - s * r)
    attn = e * r                                      # (TB, O, I) f32

    # scored_output: einsum('boi,bid->bod')
    scored = lax.dot_general(
        attn.astype(mx), c_mx,
        dimension_numbers=(((2,), (1,)), ((0,), (0,))),
        preferred_element_type=jnp.float32)           # (TB, O, D) f32

    # Final linear, batches folded into M:
    #   tanh(cat([scored, o], -1) @ W.T + b) == tanh(scored @ Wt[:D] + o @ Wt[D:] + b)
    scored2 = scored.reshape(TB * O, D)
    o2 = o.reshape(TB * O, D)
    w1 = wt_ref[:D, :]
    w2 = wt_ref[D:, :]
    y = jnp.tanh(
        jnp.dot(scored2.astype(mx), w1.astype(mx), preferred_element_type=jnp.float32)
        + jnp.dot(o2.astype(mx), w2.astype(mx), preferred_element_type=jnp.float32)
        + b_ref[...].astype(jnp.float32)
    )

    y_ref[...] = y.reshape(TB, O, D).astype(y_ref.dtype)
    attn_ref[...] = attn.astype(attn_ref.dtype)


def _pick_block_b(B, cap=64):
    """Largest divisor of B <= cap, preferring >= 2 grid steps (v7x dual-TC)."""
    divisors = [d for d in range(1, min(B, cap) + 1) if B % d == 0]
    multi_step = [d for d in divisors if B // d >= 2]
    return max(multi_step) if multi_step else max(divisors)


def attention_forward(output, context, weight, bias, *, block_b=None, mxu_dtype=None):
    """output: (B, O, D), context: (B, I, D), weight: (D, 2D) [torch layout], bias: (D,)."""
    B, O, D = output.shape
    _, I, _ = context.shape

    TB = _pick_block_b(B) if block_b is None else block_b
    assert B % TB == 0, "block_b must divide the batch size"

    # Pre-transpose the Linear weight once (kept in its original dtype); the
    # kernel then does plain row-major matmuls on the MXU.
    wt = weight.T                       # (2D, D)
    b2 = bias.reshape(1, D)             # broadcast-friendly (1, D)

    kernel = functools.partial(_attention_kernel, mxu_dtype=mxu_dtype)

    y, attn = pl.pallas_call(
        kernel,
        out_shape=(
            jax.ShapeDtypeStruct((B, O, D), output.dtype),
            # attn returned in the input dtype, matching the torch module's contract.
            jax.ShapeDtypeStruct((B, O, I), output.dtype),
        ),
        grid=(B // TB,),
        in_specs=[
            pl.BlockSpec((TB, O, D), lambda b: (b, 0, 0)),
            pl.BlockSpec((TB, I, D), lambda b: (b, 0, 0)),
            pl.BlockSpec((2 * D, D), lambda b: (0, 0)),
            pl.BlockSpec((1, D), lambda b: (0, 0)),
        ],
        out_specs=(
            pl.BlockSpec((TB, O, D), lambda b: (b, 0, 0)),
            pl.BlockSpec((TB, O, I), lambda b: (b, 0, 0)),
        ),
        compiler_params=pltpu.CompilerParams(
            dimension_semantics=("parallel",),
        ),
    )(output, context, wt, b2)
    return y, attn


def attention_reference(output, context, weight, bias):
    """Pure-JAX mirror of the PyTorch forward, for correctness checking."""
    attn = jnp.einsum("bod,bid->boi", output, context)
    attn = jax.nn.softmax(attn, axis=1)               # dim=1 as in the module
    scored = jnp.einsum("boi,bid->bod", attn, context)
    combined = jnp.concatenate([scored, output], axis=2)
    y = jnp.tanh(combined @ weight.T + bias)
    return y, attn


if __name__ == "__main__":
    B, O, I, D = 2, 8, 8, 32   # batch=2, output_len=8, input_len=8, hidden=32

    key = jax.random.PRNGKey(0)
    k_out, k_ctx, k_w, k_b = jax.random.split(key, 4)

    output = jax.random.normal(k_out, (B, O, D), dtype=jnp.float32)
    context = jax.random.normal(k_ctx, (B, I, D), dtype=jnp.float32)
    # nn.Linear(dim*2, dim): weight (D, 2D), bias (D,) — deterministic init.
    weight = jax.random.normal(k_w, (D, 2 * D), dtype=jnp.float32) * 0.1
    bias = jax.random.normal(k_b, (D,), dtype=jnp.float32) * 0.1

    y, attn = attention_forward(output, context, weight, bias)
    jax.block_until_ready((y, attn))

    y_ref, attn_ref = attention_reference(output, context, weight, bias)
    assert jnp.allclose(y, y_ref, atol=1e-5, rtol=1e-5), "output mismatch"
    assert jnp.allclose(attn, attn_ref, atol=1e-5, rtol=1e-5), "attn mismatch"

    print("KERNEL_OK")
</pallas_src>

<mosaic_0001>
module attributes {stable_mosaic.version = 11 : i64} {
  func.func @_attention_kernel(%arg0: i32, %arg1: memref<1x8x32xf32, #tpu.memory_space<vmem>>, %arg2: memref<1x8x32xf32, #tpu.memory_space<vmem>>, %arg3: memref<64x32xf32, #tpu.memory_space<vmem>>, %arg4: memref<1x32xf32, #tpu.memory_space<vmem>>, %arg5: memref<1x8x32xf32, #tpu.memory_space<vmem>>, %arg6: memref<1x8x8xf32, #tpu.memory_space<vmem>>) attributes {dimension_semantics = [#tpu.dimension_semantics<parallel>], iteration_bounds = array<i64: 2>, scalar_prefetch = 0 : i64, scratch_operands = 0 : i64, tpu.core_type = #tpu.core_type<tc>, window_params = [{transform_indices = @transform_0, window_bounds = array<i64: 1, 8, 32>}, {transform_indices = @transform_1, window_bounds = array<i64: 1, 8, 32>}, {pipeline_mode = #tpu.pipeline_mode<synchronous>, transform_indices = @transform_2, window_bounds = array<i64: 64, 32>}, {pipeline_mode = #tpu.pipeline_mode<synchronous>, transform_indices = @transform_3, window_bounds = array<i64: 1, 32>}, {transform_indices = @transform_4, window_bounds = array<i64: 1, 8, 32>}, {transform_indices = @transform_5, window_bounds = array<i64: 1, 8, 8>}]} {
    %c0 = arith.constant 0 : index
    %c0_0 = arith.constant 0 : index
    %c0_1 = arith.constant 0 : index
    %0 = vector.load %arg1[%c0, %c0_0, %c0_1] : memref<1x8x32xf32, #tpu.memory_space<vmem>>, vector<1x8x32xf32>
    %c0_2 = arith.constant 0 : index
    %c0_3 = arith.constant 0 : index
    %c0_4 = arith.constant 0 : index
    %1 = vector.load %arg2[%c0_2, %c0_3, %c0_4] : memref<1x8x32xf32, #tpu.memory_space<vmem>>, vector<1x8x32xf32>
    %cst = arith.constant dense<0.000000e+00> : vector<1x8x8xf32>
    %2 = tpu.matmul %0, %1, %cst {dimension_numbers = #tpu.dot_dimension_numbers<[2], [2], [1], [1], [0, 0, 0, 1, 1, 1], [0], [0]>} : vector<1x8x32xf32>, vector<1x8x32xf32>, vector<1x8x8xf32> -> vector<1x8x8xf32>
    %cst_5 = arith.constant dense<0xFF800000> : vector<1x8xf32>
    %3 = vector.multi_reduction <maximumf>, %2, %cst_5 [1] : vector<1x8x8xf32> to vector<1x8xf32>
    %4 = vector.shape_cast %3 : vector<1x8xf32> to vector<1x1x8xf32>
    %5 = vector.broadcast %4 : vector<1x1x8xf32> to vector<1x8x8xf32>
    %6 = arith.subf %2, %5 : vector<1x8x8xf32>
    %7 = math.exp %6 : vector<1x8x8xf32>
    %cst_6 = arith.constant dense<0.000000e+00> : vector<1x8xf32>
    %8 = vector.multi_reduction <add>, %7, %cst_6 [1] : vector<1x8x8xf32> to vector<1x8xf32>
    %9 = vector.shape_cast %8 : vector<1x8xf32> to vector<1x1x8xf32>
    %10 = tpu.reciprocal %9 {approx = true} : vector<1x1x8xf32> -> vector<1x1x8xf32>
    %11 = arith.mulf %9, %10 : vector<1x1x8xf32>
    %cst_7 = arith.constant 2.000000e+00 : f32
    %12 = vector.broadcast %cst_7 : f32 to vector<1x1x8xf32>
    %13 = arith.subf %12, %11 : vector<1x1x8xf32>
    %14 = arith.mulf %10, %13 : vector<1x1x8xf32>
    %15 = vector.broadcast %14 : vector<1x1x8xf32> to vector<1x8x8xf32>
    %16 = arith.mulf %7, %15 : vector<1x8x8xf32>
    %cst_8 = arith.constant dense<0.000000e+00> : vector<1x8x32xf32>
    %17 = tpu.matmul %16, %1, %cst_8 {dimension_numbers = #tpu.dot_dimension_numbers<[2], [1], [1], [2], [0, 0, 0, 1, 1, 2], [0], [0]>} : vector<1x8x8xf32>, vector<1x8x32xf32>, vector<1x8x32xf32> -> vector<1x8x32xf32>
    %18 = vector.shape_cast %17 : vector<1x8x32xf32> to vector<8x32xf32>
    %19 = vector.shape_cast %0 : vector<1x8x32xf32> to vector<8x32xf32>
    %c0_9 = arith.constant 0 : index
    %c0_10 = arith.constant 0 : index
    %20 = vector.load %arg3[%c0_9, %c0_10] : memref<64x32xf32, #tpu.memory_space<vmem>>, vector<32x32xf32>
    %c32 = arith.constant 32 : index
    %c0_11 = arith.constant 0 : index
    %21 = vector.load %arg3[%c32, %c0_11] : memref<64x32xf32, #tpu.memory_space<vmem>>, vector<32x32xf32>
    %cst_12 = arith.constant dense<0.000000e+00> : vector<8x32xf32>
    %22 = tpu.matmul %18, %20, %cst_12 {dimension_numbers = #tpu.dot_dimension_numbers<[1], [0], [0], [1], [0, 0, 1, 1], [], []>} : vector<8x32xf32>, vector<32x32xf32>, vector<8x32xf32> -> vector<8x32xf32>
    %cst_13 = arith.constant dense<0.000000e+00> : vector<8x32xf32>
    %23 = tpu.matmul %19, %21, %cst_13 {dimension_numbers = #tpu.dot_dimension_numbers<[1], [0], [0], [1], [0, 0, 1, 1], [], []>} : vector<8x32xf32>, vector<32x32xf32>, vector<8x32xf32> -> vector<8x32xf32>
    %24 = arith.addf %22, %23 : vector<8x32xf32>
    %c0_14 = arith.constant 0 : index
    %c0_15 = arith.constant 0 : index
    %25 = vector.load %arg4[%c0_14, %c0_15] : memref<1x32xf32, #tpu.memory_space<vmem>>, vector<1x32xf32>
    %26 = vector.broadcast %25 : vector<1x32xf32> to vector<8x32xf32>
    %27 = arith.addf %24, %26 : vector<8x32xf32>
    %28 = math.tanh %27 : vector<8x32xf32>
    %29 = vector.shape_cast %28 : vector<8x32xf32> to vector<1x8x32xf32>
    %c0_16 = arith.constant 0 : index
    %c0_17 = arith.constant 0 : index
    %c0_18 = arith.constant 0 : index
    %30 = vector.load %arg5[%c0_16, %c0_17, %c0_18] : memref<1x8x32xf32, #tpu.memory_space<vmem>>, vector<1x8x32xf32>
    tpu.vector_store %arg5[%c0_16, %c0_17, %c0_18], %29 {strides = array<i32>} : memref<1x8x32xf32, #tpu.memory_space<vmem>>, vector<1x8x32xf32>,
    %c0_19 = arith.constant 0 : index
    %c0_20 = arith.constant 0 : index
    %c0_21 = arith.constant 0 : index
    %31 = vector.load %arg6[%c0_19, %c0_20, %c0_21] : memref<1x8x8xf32, #tpu.memory_space<vmem>>, vector<1x8x8xf32>
    tpu.vector_store %arg6[%c0_19, %c0_20, %c0_21], %16 {strides = array<i32>} : memref<1x8x8xf32, #tpu.memory_space<vmem>>, vector<1x8x8xf32>,
    return
  }
  func.func @transform_0(%arg0: i32) -> (i32, i32, i32) {
    %c0_i32 = arith.constant 0 : i32
    %c0_i32_0 = arith.constant 0 : i32
    %c0_i32_1 = arith.constant 0 : i32
    return %arg0, %c0_i32, %c0_i32_0 : i32, i32, i32
  }
  func.func @transform_1(%arg0: i32) -> (i32, i32, i32) {
    %c0_i32 = arith.constant 0 : i32
    %c0_i32_0 = arith.constant 0 : i32
    %c0_i32_1 = arith.constant 0 : i32
    return %arg0, %c0_i32, %c0_i32_0 : i32, i32, i32
  }
  func.func @transform_2(%arg0: i32) -> (i32, i32) {
    %c0_i32 = arith.constant 0 : i32
    %c0_i32_0 = arith.constant 0 : i32
    %c0_i32_1 = arith.constant 0 : i32
    return %c0_i32, %c0_i32_0 : i32, i32
  }
  func.func @transform_3(%arg0: i32) -> (i32, i32) {
    %c0_i32 = arith.constant 0 : i32
    %c0_i32_0 = arith.constant 0 : i32
    %c0_i32_1 = arith.constant 0 : i32
    return %c0_i32, %c0_i32_0 : i32, i32
  }
  func.func @transform_4(%arg0: i32) -> (i32, i32, i32) {
    %c0_i32 = arith.constant 0 : i32
    %c0_i32_0 = arith.constant 0 : i32
    %c0_i32_1 = arith.constant 0 : i32
    return %arg0, %c0_i32, %c0_i32_0 : i32, i32, i32
  }
  func.func @transform_5(%arg0: i32) -> (i32, i32, i32) {
    %c0_i32 = arith.constant 0 : i32
    %c0_i32_0 = arith.constant 0 : i32
    %c0_i32_1 = arith.constant 0 : i32
    return %arg0, %c0_i32, %c0_i32_0 : i32, i32, i32
  }
}

</mosaic_0001>

<llo_original>
// kernel: tpu_custom_call.1
$region0: #{tpu_custom_call.1}
  #allocation0 [shape = 'u32[]', space=smem, size = 0x4, offset = 0x4, fixed_abs, tag = 'smem constant byte address 0x4 - core index']
  #allocation1 [shape = 'u32[144,128]{1,0:T(1,128)}', space=vmem, size = 0x12000, scoped, tag = 'internal scratch']
  %s0 = inlined_call_operand.vmem [shape: f32[2,8,32], index: 0, kind: input, shape index: {}]
  %s1 = inlined_call_operand.vmem [shape: f32[2,8,32], index: 1, kind: input, shape index: {}]
  %s2 = inlined_call_operand.vmem [shape: f32[64,32], index: 2, kind: input, shape index: {}]
  %s3 = inlined_call_operand.vmem [shape: f32[1,32], index: 3, kind: input, shape index: {}]
  %s4 = inlined_call_operand.hbm [shape: f32[2,8,32], index: 4, kind: output, shape index: {0}]
  %s5 = inlined_call_operand.hbm [shape: f32[2,8,8], index: 5, kind: output, shape index: {1}]
  %6 = xla_tuple %s4, %s5
  %s7 = sld [smem:[#allocation0]]
  $region57: #{tpu_custom_call.1} parent=0
    _
  %s9 = ssub.s32 1, %s7
  %s10 = scalar_select 0, %s9, %s7
  $region1: #{tpu_custom_call.1} parent=0
    #allocation2 [shape = 'u8[8192]{0}', space=vmem, size = 0x2000, scoped, tag = 'output window, operand 0']
    #allocation3 [shape = 's32[2]{0}', space=sflag, size = 0x8, scoped, tag = 'scoped memory for tpu_custom_call.1']
    #allocation4 [shape = 'u8[8192]{0}', space=vmem, size = 0x2000, scoped, tag = 'output window, operand 1']
    #allocation5 [shape = 's32[2]{0}', space=sflag, size = 0x8, scoped, tag = 'scoped memory for tpu_custom_call.1']
    %11 = vsyncpa [#allocation3], 0
    %s12 = scalar_lea.sflag [#allocation3], 1
    %13 = vsyncpa %s12, 0
    %14 = vsyncpa [#allocation5], 0
    %s15 = scalar_lea.sflag [#allocation5], 1
    %16 = vsyncpa %s15, 0
    loop: start=0, step=1, limit=4
    $region2: #{tpu_custom_call.1} parent=1 // loop_pre_header
      _
    $region3: #{tpu_custom_call.1} parent=1 // loop_header
      %s18 = sphi 0, %s22
      %p19 = scmp.ge.s32.totalorder %s18, 4
      %s28 = sphi 0, %s30
      %s31 = sphi 0, %s28
      %s32 = sphi 0, %s31
      %s48 = sphi 0, %s32
      %s54 = sphi 0, %s56
      %s57 = sphi 0, %s54
      %s58 = sphi 0, %s57
      %s74 = sphi 0, %s58
      %s78 = sphi 0, %s78
      %s80 = sphi 0, %s78
      %s81 = sphi 0, %s80
      %s95 = sphi 0, %s81
      %s99 = sphi 0, %s99
      %s101 = sphi 0, %s99
      %s102 = sphi 0, %s101
      %s116 = sphi 0, %s102
      %s122 = sphi 0, %s124
      %s125 = sphi 0, %s122
      %s126 = sphi 0, %s125
      %s142 = sphi 0, %s126
      %s148 = sphi 0, %s150
      %s151 = sphi 0, %s148
      %s152 = sphi 0, %s151
      %s168 = sphi 0, %s152
    $region4: #{tpu_custom_call.1} parent=1 // loop_header_branch
      %21 = sbr.rel (%p19) target = $region8
    $region5: #{tpu_custom_call.1} parent=1 // loop_body
      %s23 = ssub.s32 %s18, 1
      %s24 = ssub.s32 %s18, 2
      %s25 = sadd.s32 %s18, 1
      %s26 = ssub.s32 %s18, %s25
      %p27 = scmp.eq.s32.totalorder %s26, 0
      %s29 = sadd.s32 %s28, 1
      %s30 = scalar_select %p27, %s28, %s29
      %p33 = pneg %p27
      %p34 = scmp.eq.s32.totalorder %s18, 1
      %p35 = por %p33, %p34
      %p36 = scmp.ne.s32.totalorder %s28, %s31
      %p37 = scmp.eq.s32.totalorder %s18, 0
      %p38 = por %p36, %p37
      %p39 = scmp.ne.s32.totalorder %s28, %s31
      %p40 = scmp.eq.s32.totalorder %s23, 1
      %p41 = por %p39, %p40
      %p42 = scmp.ne.s32.totalorder %s31, %s32
      %p43 = scmp.eq.s32.totalorder %s23, 0
      %p44 = por %p42, %p43
      %p45 = scmp.ne.s32.totalorder %s31, %s32
      %p46 = scmp.eq.s32.totalorder %s24, 1
      %p47 = por %p45, %p46
      %p49 = scmp.ne.s32.totalorder %s32, %s48
      %p50 = scmp.eq.s32.totalorder %s24, 0
      %p51 = por %p49, %p50
      %s52 = ssub.s32 %s18, %s25
      %p53 = scmp.eq.s32.totalorder %s52, 0
      %s55 = sadd.s32 %s54, 1
      %s56 = scalar_select %p53, %s54, %s55
      %p59 = pneg %p53
      %p60 = scmp.eq.s32.totalorder %s18, 1
      %p61 = por %p59, %p60
      %p62 = scmp.ne.s32.totalorder %s54, %s57
      %p63 = scmp.eq.s32.totalorder %s18, 0
      %p64 = por %p62, %p63
      %p65 = scmp.ne.s32.totalorder %s54, %s57
      %p66 = scmp.eq.s32.totalorder %s23, 1
      %p67 = por %p65, %p66
      %p68 = scmp.ne.s32.totalorder %s57, %s58
      %p69 = scmp.eq.s32.totalorder %s23, 0
      %p70 = por %p68, %p69
      %p71 = scmp.ne.s32.totalorder %s57, %s58
      %p72 = scmp.eq.s32.totalorder %s24, 1
      %p73 = por %p71, %p72
      %p75 = scmp.ne.s32.totalorder %s58, %s74
      %p76 = scmp.eq.s32.totalorder %s24, 0
      %p77 = por %p75, %p76
      %s79 = sadd.s32 %s78, 1
      %p82 = scmp.eq.s32.totalorder %s18, 1
      %p83 = scmp.ne.s32.totalorder %s78, %s80
      %p84 = scmp.eq.s32.totalorder %s18, 0
      %p85 = por %p83, %p84
      %p86 = scmp.ne.s32.totalorder %s78, %s80
      %p87 = scmp.eq.s32.totalorder %s23, 1
      %p88 = por %p86, %p87
      %p89 = scmp.ne.s32.totalorder %s80, %s81
      %p90 = scmp.eq.s32.totalorder %s23, 0
      %p91 = por %p89, %p90
      %p92 = scmp.ne.s32.totalorder %s80, %s81
      %p93 = scmp.eq.s32.totalorder %s24, 1
      %p94 = por %p92, %p93
      %p96 = scmp.ne.s32.totalorder %s81, %s95
      %p97 = scmp.eq.s32.totalorder %s24, 0
      %p98 = por %p96, %p97
      %s100 = sadd.s32 %s99, 1
      %p103 = scmp.eq.s32.totalorder %s18, 1
      %p104 = scmp.ne.s32.totalorder %s99, %s101
      %p105 = scmp.eq.s32.totalorder %s18, 0
      %p106 = por %p104, %p105
      %p107 = scmp.ne.s32.totalorder %s99, %s101
      %p108 = scmp.eq.s32.totalorder %s23, 1
      %p109 = por %p107, %p108
      %p110 = scmp.ne.s32.totalorder %s101, %s102
      %p111 = scmp.eq.s32.totalorder %s23, 0
      %p112 = por %p110, %p111
      %p113 = scmp.ne.s32.totalorder %s101, %s102
      %p114 = scmp.eq.s32.totalorder %s24, 1
      %p115 = por %p113, %p114
      %p117 = scmp.ne.s32.totalorder %s102, %s116
      %p118 = scmp.eq.s32.totalorder %s24, 0
      %p119 = por %p117, %p118
      %s120 = ssub.s32 %s18, %s25
      %p121 = scmp.eq.s32.totalorder %s120, 0
      %s123 = sadd.s32 %s122, 1
      %s124 = scalar_select %p121, %s122, %s123
      %p127 = pneg %p121
      %p128 = scmp.eq.s32.totalorder %s18, 1
      %p129 = por %p127, %p128
      %p130 = scmp.ne.s32.totalorder %s122, %s125
      %p131 = scmp.eq.s32.totalorder %s18, 0
      %p132 = por %p130, %p131
      %p133 = scmp.ne.s32.totalorder %s122, %s125
      %p134 = scmp.eq.s32.totalorder %s23, 1
      %p135 = por %p133, %p134
      %p136 = scmp.ne.s32.totalorder %s125, %s126
      %p137 = scmp.eq.s32.totalorder %s23, 0
      %p138 = por %p136, %p137
      %p139 = scmp.ne.s32.totalorder %s125, %s126
      %p140 = scmp.eq.s32.totalorder %s24, 1
      %p141 = por %p139, %p140
      %p143 = scmp.ne.s32.totalorder %s126, %s142
      %p144 = scmp.eq.s32.totalorder %s24, 0
      %p145 = por %p143, %p144
      %s146 = ssub.s32 %s18, %s25
      %p147 = scmp.eq.s32.totalorder %s146, 0
      %s149 = sadd.s32 %s148, 1
      %s150 = scalar_select %p147, %s148, %s149
      %p153 = pneg %p147
      %p154 = scmp.eq.s32.totalorder %s18, 1
      %p155 = por %p153, %p154
      %p156 = scmp.ne.s32.totalorder %s148, %s151
      %p157 = scmp.eq.s32.totalorder %s18, 0
      %p158 = por %p156, %p157
      %p159 = scmp.ne.s32.totalorder %s148, %s151
      %p160 = scmp.eq.s32.totalorder %s23, 1
      %p161 = por %p159, %p160
      %p162 = scmp.ne.s32.totalorder %s151, %s152
      %p163 = scmp.eq.s32.totalorder %s23, 0
      %p164 = por %p162, %p163
      %p165 = scmp.ne.s32.totalorder %s151, %s152
      %p166 = scmp.eq.s32.totalorder %s24, 1
      %p167 = por %p165, %p166
      %p169 = scmp.ne.s32.totalorder %s152, %s168
      %p170 = scmp.eq.s32.totalorder %s24, 0
      %p171 = por %p169, %p170
      %p172 = scmp.le.s32.totalorder 1, %s18
      %p173 = scmp.lt.s32.totalorder %s18, 3
      %p174 = pnand %p172, %p173
      %p175 = pneg %p174
      // Predicated region
      $region9: #{tpu_custom_call.1} parent=5 // pred_check
        _
      $region10: #{tpu_custom_call.1} parent=5 // pred_check_branch
        %177 = sbr.rel (%p174) target = $region12
      $region11: #{tpu_custom_call.1} parent=5 // pred_region
        %s178 = ssub.s32 %s18, 1
        // Predicated region
        $region13: #{tpu_custom_call.1} parent=11 // pred_check
          %p179 = pneg %p91
        $region14: #{tpu_custom_call.1} parent=11 // pred_check_branch
          %181 = sbr.rel (%p179) target = $region16
        $region15: #{tpu_custom_call.1} parent=11 // pred_region
          _
        $region16: #{tpu_custom_call.1} parent=11 // pred_fallthru
          _
        // Predicated region
        $region17: #{tpu_custom_call.1} parent=11 // pred_check
          %p182 = pneg %p112
        $region18: #{tpu_custom_call.1} parent=11 // pred_check_branch
          %184 = sbr.rel (%p182) target = $region20
        $region19: #{tpu_custom_call.1} parent=11 // pred_region
          _
        $region20: #{tpu_custom_call.1} parent=11 // pred_fallthru
          _
      $region12: #{tpu_custom_call.1} parent=5 // pred_fallthru
        _
      %p185 = scmp.lt.s32.totalorder %s18, 2
      // Predicated region
      $region21: #{tpu_custom_call.1} parent=5 // pred_check
        %p186 = pneg %p185
      $region22: #{tpu_custom_call.1} parent=5 // pred_check_branch
        %188 = sbr.rel (%p186) target = $region24
      $region23: #{tpu_custom_call.1} parent=5 // pred_region
        // Predicated region
        $region25: #{tpu_custom_call.1} parent=23 // pred_check
          %p189 = pneg %p38
        $region26: #{tpu_custom_call.1} parent=23 // pred_check_branch
          %191 = sbr.rel (%p189) target = $region28
        $region27: #{tpu_custom_call.1} parent=23 // pred_region
          %p192 = scmp.lt.s32.totalorder %s18, 1
          %s193 = scalar_select %p192, %s18, 1
          %s194 = smul.addr %s193, 8
          %s195 = scalar_lea.vmem %s0, %s194
        $region28: #{tpu_custom_call.1} parent=23 // pred_fallthru
          _
        // Predicated region
        $region29: #{tpu_custom_call.1} parent=23 // pred_check
          %p196 = pneg %p64
        $region30: #{tpu_custom_call.1} parent=23 // pred_check_branch
          %198 = sbr.rel (%p196) target = $region32
        $region31: #{tpu_custom_call.1} parent=23 // pred_region
          %p199 = scmp.lt.s32.totalorder %s18, 1
          %s200 = scalar_select %p199, %s18, 1
          %s201 = smul.addr %s200, 8
          %s202 = scalar_lea.vmem %s1, %s201
        $region32: #{tpu_custom_call.1} parent=23 // pred_fallthru
          _
      $region24: #{tpu_custom_call.1} parent=5 // pred_fallthru
        _
      %p203 = scmp.le.s32.totalorder 1, %s18
      %p204 = scmp.lt.s32.totalorder %s18, 3
      %p205 = pnand %p203, %p204
      %p206 = pneg %p205
      // Predicated region
      $region33: #{tpu_custom_call.1} parent=5 // pred_check
        _
      $region34: #{tpu_custom_call.1} parent=5 // pred_check_branch
        %208 = sbr.rel (%p205) target = $region36
      $region35: #{tpu_custom_call.1} parent=5 // pred_region
        %s209 = ssub.s32 %s18, 1
        %p210 = scmp.lt.s32.totalorder %s23, 1
        %s211 = scalar_select %p210, %s23, 1
        %s212 = smul.addr %s211, 8
        %s213 = scalar_lea.vmem %s0, %s212
        %p214 = pneg %p44
        %p215 = pneg %p41
        %p216 = scmp.lt.s32.totalorder %s23, 1
        %s217 = scalar_select %p216, %s23, 1
        %s218 = smul.addr %s217, 8
        %s219 = scalar_lea.vmem %s1, %s218
        %p220 = pneg %p70
        %p221 = pneg %p67
        %p222 = pneg %p91
        %p223 = pneg %p88
        %p224 = pneg %p112
        %p225 = pneg %p109
        %p226 = pneg %p138
        %p227 = pneg %p135
        %s228 = sand.u32 %s125, 1
        %s229 = scalar_lea.sflag [#allocation3], %s228
        %s230 = sand.u32 %s125, 1
        %s231 = smul.addr %s230, 8
        %s232 = scalar_lea.vmem [#allocation2], %s231
        %p233 = pneg %p164
        %p234 = pneg %p161
        %s235 = sand.u32 %s151, 1
        %s236 = scalar_lea.sflag [#allocation5], %s235
        %s237 = sand.u32 %s151, 1
        %s238 = smul.addr %s237, 8
        %s239 = scalar_lea.vmem [#allocation4], %s238
        %p240 = scmp.lt.s32.totalorder %s23, 1
        %s241 = scalar_select %p240, %s23, 1
        %s242 = smul.addr %s241, 8
        %s243 = scalar_lea.vmem %s0, %s242
        %p244 = scmp.lt.s32.totalorder %s23, 1
        %s245 = scalar_select %p244, %s23, 1
        %s246 = smul.addr %s245, 8
        %s247 = scalar_lea.vmem %s1, %s246
        %v248 = vld [vmem:[%s243] sm:$0xff]
        %v249 = vld [vmem:[%s247] sm:$0xff]
        %vm250 = vcmask 261120
        %v252 = vsel %vm250, %v248, 0
        %v255 = vsel %vm250, %v249, 0
        %257 = vmatprep.subr.mxu0 0.0
        %258 = vmatpush1.xpose.msra.mxu0 %v255
        %259 = vmatprep.subr.mxu0 0.0
        %260 = vmatpush1.xpose.msra.mxu0 0.0
        %261 = vmatprep.subr.mxu0 0.0
        %262 = vmatpush1.xpose.msra.mxu0 0.0
        %263 = vmatprep.subr.mxu0 0.0
        %264 = vmatpush1.xpose.msra.mxu0 0.0
        %265 = vmatprep.subr.mxu0 0.0
        %266 = vmatpush1.xpose.msra.mxu0 0.0
        %267 = vmatprep.subr.mxu0 0.0
        %268 = vmatpush1.xpose.msra.mxu0 0.0
        %269 = vmatprep.subr.mxu0 0.0
        %270 = vmatpush1.xpose.msra.mxu0 0.0
        %271 = vmatprep.subr.mxu0 0.0
        %272 = vmatpush1.xpose.msra.mxu0 0.0
        %273 = vmatprep.subr.mxu0 0.0
        %274 = vmatpush1.xpose.msra.mxu0 0.0
        %275 = vmatprep.subr.mxu0 0.0
        %276 = vmatpush1.xpose.msra.mxu0 0.0
        %277 = vmatprep.subr.mxu0 0.0
        %278 = vmatpush1.xpose.msra.mxu0 0.0
        %279 = vmatprep.subr.mxu0 0.0
        %280 = vmatpush1.xpose.msra.mxu0 0.0
        %281 = vmatprep.subr.mxu0 0.0
        %282 = vmatpush1.xpose.msra.mxu0 0.0
        %283 = vmatprep.subr.mxu0 0.0
        %284 = vmatpush1.xpose.msra.mxu0 0.0
        %285 = vmatprep.subr.mxu0 0.0
        %286 = vmatpush1.xpose.msra.mxu0 0.0
        %287 = vmatprep.subr.mxu0 0.0
        %288 = vmatpush1.xpose.msra.mxu0 0.0
        %289 = vmatprep.subr.mxu0 0.0
        %290 = vmatpush1.xpose.msra.mxu0 0.0
        %291 = vmatprep.subr.mxu0 0.0
        %292 = vmatpush1.xpose.msra.mxu0 0.0
        %293 = vmatprep.subr.mxu0 0.0
        %294 = vmatpush1.xpose.msra.mxu0 0.0
        %295 = vmatprep.subr.mxu0 0.0
        %296 = vmatpush1.xpose.msra.mxu0 0.0
        %297 = vmatprep.subr.mxu0 0.0
        %298 = vmatpush1.xpose.msra.mxu0 0.0
        %299 = vmatprep.subr.mxu0 0.0
        %300 = vmatpush1.xpose.msra.mxu0 0.0
        %301 = vmatprep.subr.mxu0 0.0
        %302 = vmatpush1.xpose.msra.mxu0 0.0
        %303 = vmatprep.subr.mxu0 0.0
        %304 = vmatpush1.xpose.msra.mxu0 0.0
        %305 = vmatprep.subr.mxu0 0.0
        %306 = vmatpush1.xpose.msra.mxu0 0.0
        %307 = vmatprep.subr.mxu0 0.0
        %308 = vmatpush1.xpose.msra.mxu0 0.0
        %309 = vmatprep.subr.mxu0 0.0
        %310 = vmatpush1.xpose.msra.mxu0 0.0
        %311 = vmatprep.subr.mxu0 0.0
        %312 = vmatpush1.xpose.msra.mxu0 0.0
        %313 = vmatprep.subr.mxu0 0.0
        %314 = vmatpush1.xpose.msra.mxu0 0.0
        %315 = vmatprep.subr.mxu0 0.0
        %316 = vmatpush1.xpose.msra.mxu0 0.0
        %317 = vmatprep.subr.mxu0 0.0
        %318 = vmatpush1.xpose.msra.mxu0 0.0
        %319 = vmatprep.subr.mxu0 0.0
        %320 = vmatpush1.xpose.msra.mxu0 0.0
        %321 = vmatprep.mubr.f32.mxu0 0.0
        %322 = vmatmul.mubr.f32.gmra.mrb[0].mxu0 %v252
        %v323 = vpop.f32.mrb[0].mxu0
        %v324 = vadd.f32 0.0, %v323
        %v325 = vpop.f32.mrb[0].mxu0
        %326 = vdwg.mxu0
        %vm327 = vcmask 64512
        %v328 = vsel %vm327, %v324, -inf
        %v329 = vrot.slane %v328, 4
        %v330 = vmax.f32 %v328, %v329
        %v331 = vrot.slane %v330, 2
        %v332 = vmax.f32 %v330, %v331
        %v333 = vrot.slane %v332, 1
        %v334 = vmax.f32 %v332, %v333
        %v335 = vsub.f32 %v324, %v334
        %v336 = vmul.f32 %v335, 1.442695
        %v337 = vpow.pop %v336
        %v338 = vsel %vm327, %v337, 0.0
        %v339 = vrot.slane %v338, 4
        %v340 = vadd.f32 %v338, %v339
        %v341 = vrot.slane %v340, 2
        %v342 = vadd.f32 %v340, %v341
        %v343 = vrot.slane %v342, 1
        %v344 = vadd.f32 %v342, %v343
        %v345 = vrcp.pop %v344
        %v346 = vmul.f32 %v344, %v345
        %v347 = vsub.f32 2.0, %v346
        %v348 = vmul.f32 %v345, %v347
        %v349 = vmul.f32 %v337, %v348
        %v351 = vsel %vm327, %v349, 0
        %353 = vmatprep.subr.mxu0 0.0
        %354 = vmatpush1.msra.mxu0 %v249
        %355 = vmatprep.subr.mxu0 0.0
        %356 = vmatpush1.msra.mxu0 0.0
        %357 = vmatprep.subr.mxu0 0.0
        %358 = vmatpush1.msra.mxu0 0.0
        %359 = vmatprep.subr.mxu0 0.0
        %360 = vmatpush1.msra.mxu0 0.0
        %361 = vmatprep.subr.mxu0 0.0
        %362 = vmatpush1.msra.mxu0 0.0
        %363 = vmatprep.subr.mxu0 0.0
        %364 = vmatpush1.msra.mxu0 0.0
        %365 = vmatprep.subr.mxu0 0.0
        %366 = vmatpush1.msra.mxu0 0.0
        %367 = vmatprep.subr.mxu0 0.0
        %368 = vmatpush1.msra.mxu0 0.0
        %369 = vmatprep.subr.mxu0 0.0
        %370 = vmatpush1.msra.mxu0 0.0
        %371 = vmatprep.subr.mxu0 0.0
        %372 = vmatpush1.msra.mxu0 0.0
        %373 = vmatprep.subr.mxu0 0.0
        %374 = vmatpush1.msra.mxu0 0.0
        %375 = vmatprep.subr.mxu0 0.0
        %376 = vmatpush1.msra.mxu0 0.0
        %377 = vmatprep.subr.mxu0 0.0
        %378 = vmatpush1.msra.mxu0 0.0
        %379 = vmatprep.subr.mxu0 0.0
        %380 = vmatpush1.msra.mxu0 0.0
        %381 = vmatprep.subr.mxu0 0.0
        %382 = vmatpush1.msra.mxu0 0.0
        %383 = vmatprep.subr.mxu0 0.0
        %384 = vmatpush1.msra.mxu0 0.0
        %385 = vmatprep.subr.mxu0 0.0
        %386 = vmatpush1.msra.mxu0 0.0
        %387 = vmatprep.subr.mxu0 0.0
        %388 = vmatpush1.msra.mxu0 0.0
        %389 = vmatprep.subr.mxu0 0.0
        %390 = vmatpush1.msra.mxu0 0.0
        %391 = vmatprep.subr.mxu0 0.0
        %392 = vmatpush1.msra.mxu0 0.0
        %393 = vmatprep.subr.mxu0 0.0
        %394 = vmatpush1.msra.mxu0 0.0
        %395 = vmatprep.subr.mxu0 0.0
        %396 = vmatpush1.msra.mxu0 0.0
        %397 = vmatprep.subr.mxu0 0.0
        %398 = vmatpush1.msra.mxu0 0.0
        %399 = vmatprep.subr.mxu0 0.0
        %400 = vmatpush1.msra.mxu0 0.0
        %401 = vmatprep.subr.mxu0 0.0
        %402 = vmatpush1.msra.mxu0 0.0
        %403 = vmatprep.subr.mxu0 0.0
        %404 = vmatpush1.msra.mxu0 0.0
        %405 = vmatprep.subr.mxu0 0.0
        %406 = vmatpush1.msra.mxu0 0.0
        %407 = vmatprep.subr.mxu0 0.0
        %408 = vmatpush1.msra.mxu0 0.0
        %409 = vmatprep.subr.mxu0 0.0
        %410 = vmatpush1.msra.mxu0 0.0
        %411 = vmatprep.subr.mxu0 0.0
        %412 = vmatpush1.msra.mxu0 0.0
        %413 = vmatprep.subr.mxu0 0.0
        %414 = vmatpush1.msra.mxu0 0.0
        %415 = vmatprep.subr.mxu0 0.0
        %416 = vmatpush1.msra.mxu0 0.0
        %417 = vmatprep.mubr.f32.mxu0 0.0
        %418 = vmatmul.mubr.f32.gmra.mrb[0].mxu0 %v351
        %v419 = vpop.f32.mrb[0].mxu0
        %v420 = vadd.f32 0.0, %v419
        %v421 = vpop.f32.mrb[0].mxu0
        %422 = vdwg.mxu0
        %v423 = vld [vmem:[%s2] sm:$0xff]
        %v424 = vld [vmem:[%s2 + $0x8] sm:$0xff]
        %v425 = vld [vmem:[%s2 + $0x10] sm:$0xff]
        %v426 = vld [vmem:[%s2 + $0x18] sm:$0xff]
        %v427 = vld [vmem:[%s2 + $0x20] sm:$0xff]
        %v428 = vld [vmem:[%s2 + $0x28] sm:$0xff]
        %v429 = vld [vmem:[%s2 + $0x30] sm:$0xff]
        %v430 = vld [vmem:[%s2 + $0x38] sm:$0xff]
        %431 = vmatprep.subr.mxu0 0.0
        %432 = vmatpush1.msra.mxu0 %v427
        %433 = vmatprep.subr.mxu0 0.0
        %434 = vmatpush1.msra.mxu0 %v428
        %435 = vmatprep.subr.mxu0 0.0
        %436 = vmatpush1.msra.mxu0 %v429
        %437 = vmatprep.subr.mxu0 0.0
        %438 = vmatpush1.msra.mxu0 %v430
        %439 = vmatprep.subr.mxu0 0.0
        %440 = vmatpush1.msra.mxu0 0.0
        %441 = vmatprep.subr.mxu0 0.0
        %442 = vmatpush1.msra.mxu0 0.0
        %443 = vmatprep.subr.mxu0 0.0
        %444 = vmatpush1.msra.mxu0 0.0
        %445 = vmatprep.subr.mxu0 0.0
        %446 = vmatpush1.msra.mxu0 0.0
        %447 = vmatprep.subr.mxu0 0.0
        %448 = vmatpush1.msra.mxu0 0.0
        %449 = vmatprep.subr.mxu0 0.0
        %450 = vmatpush1.msra.mxu0 0.0
        %451 = vmatprep.subr.mxu0 0.0
        %452 = vmatpush1.msra.mxu0 0.0
        %453 = vmatprep.subr.mxu0 0.0
        %454 = vmatpush1.msra.mxu0 0.0
        %455 = vmatprep.subr.mxu0 0.0
        %456 = vmatpush1.msra.mxu0 0.0
        %457 = vmatprep.subr.mxu0 0.0
        %458 = vmatpush1.msra.mxu0 0.0
        %459 = vmatprep.subr.mxu0 0.0
        %460 = vmatpush1.msra.mxu0 0.0
        %461 = vmatprep.subr.mxu0 0.0
        %462 = vmatpush1.msra.mxu0 0.0
        %463 = vmatprep.subr.mxu0 0.0
        %464 = vmatpush1.msra.mxu0 0.0
        %465 = vmatprep.subr.mxu0 0.0
        %466 = vmatpush1.msra.mxu0 0.0
        %467 = vmatprep.subr.mxu0 0.0
        %468 = vmatpush1.msra.mxu0 0.0
        %469 = vmatprep.subr.mxu0 0.0
        %470 = vmatpush1.msra.mxu0 0.0
        %471 = vmatprep.subr.mxu0 0.0
        %472 = vmatpush1.msra.mxu0 0.0
        %473 = vmatprep.subr.mxu0 0.0
        %474 = vmatpush1.msra.mxu0 0.0
        %475 = vmatprep.subr.mxu0 0.0
        %476 = vmatpush1.msra.mxu0 0.0
        %477 = vmatprep.subr.mxu0 0.0
        %478 = vmatpush1.msra.mxu0 0.0
        %479 = vmatprep.subr.mxu0 0.0
        %480 = vmatpush1.msra.mxu0 0.0
        %481 = vmatprep.subr.mxu0 0.0
        %482 = vmatpush1.msra.mxu0 0.0
        %483 = vmatprep.subr.mxu0 0.0
        %484 = vmatpush1.msra.mxu0 0.0
        %485 = vmatprep.subr.mxu0 0.0
        %486 = vmatpush1.msra.mxu0 0.0
        %487 = vmatprep.subr.mxu0 0.0
        %488 = vmatpush1.msra.mxu0 0.0
        %489 = vmatprep.subr.mxu0 0.0
        %490 = vmatpush1.msra.mxu0 0.0
        %491 = vmatprep.subr.mxu0 0.0
        %492 = vmatpush1.msra.mxu0 0.0
        %493 = vmatprep.subr.mxu0 0.0
        %494 = vmatpush1.msra.mxu0 0.0
        %495 = vmatprep.mubr.f32.mxu0 0.0
        %496 = vmatmul.mubr.f32.gmra.mrb[0].mxu0 %v252
        %v497 = vpop.f32.mrb[0].mxu0
        %v498 = vadd.f32 0.0, %v497
        %v499 = vpop.f32.mrb[0].mxu0
        %500 = vdwg.mxu0
        %v502 = vsel %vm250, %v420, 0
        %504 = vmatprep.subr.mxu0 0.0
        %505 = vmatpush1.msra.mxu0 %v423
        %506 = vmatprep.subr.mxu0 0.0
        %507 = vmatpush1.msra.mxu0 %v424
        %508 = vmatprep.subr.mxu0 0.0
        %509 = vmatpush1.msra.mxu0 %v425
        %510 = vmatprep.subr.mxu0 0.0
        %511 = vmatpush1.msra.mxu0 %v426
        %512 = vmatprep.subr.mxu0 0.0
        %513 = vmatpush1.msra.mxu0 0.0
        %514 = vmatprep.subr.mxu0 0.0
        %515 = vmatpush1.msra.mxu0 0.0
        %516 = vmatprep.subr.mxu0 0.0
        %517 = vmatpush1.msra.mxu0 0.0
        %518 = vmatprep.subr.mxu0 0.0
        %519 = vmatpush1.msra.mxu0 0.0
        %520 = vmatprep.subr.mxu0 0.0
        %521 = vmatpush1.msra.mxu0 0.0
        %522 = vmatprep.subr.mxu0 0.0
        %523 = vmatpush1.msra.mxu0 0.0
        %524 = vmatprep.subr.mxu0 0.0
        %525 = vmatpush1.msra.mxu0 0.0
        %526 = vmatprep.subr.mxu0 0.0
        %527 = vmatpush1.msra.mxu0 0.0
        %528 = vmatprep.subr.mxu0 0.0
        %529 = vmatpush1.msra.mxu0 0.0
        %530 = vmatprep.subr.mxu0 0.0
        %531 = vmatpush1.msra.mxu0 0.0
        %532 = vmatprep.subr.mxu0 0.0
        %533 = vmatpush1.msra.mxu0 0.0
        %534 = vmatprep.subr.mxu0 0.0
        %535 = vmatpush1.msra.mxu0 0.0
        %536 = vmatprep.subr.mxu0 0.0
        %537 = vmatpush1.msra.mxu0 0.0
        %538 = vmatprep.subr.mxu0 0.0
        %539 = vmatpush1.msra.mxu0 0.0
        %540 = vmatprep.subr.mxu0 0.0
        %541 = vmatpush1.msra.mxu0 0.0
        %542 = vmatprep.subr.mxu0 0.0
        %543 = vmatpush1.msra.mxu0 0.0
        %544 = vmatprep.subr.mxu0 0.0
        %545 = vmatpush1.msra.mxu0 0.0
        %546 = vmatprep.subr.mxu0 0.0
        %547 = vmatpush1.msra.mxu0 0.0
        %548 = vmatprep.subr.mxu0 0.0
        %549 = vmatpush1.msra.mxu0 0.0
        %550 = vmatprep.subr.mxu0 0.0
        %551 = vmatpush1.msra.mxu0 0.0
        %552 = vmatprep.subr.mxu0 0.0
        %553 = vmatpush1.msra.mxu0 0.0
        %554 = vmatprep.subr.mxu0 0.0
        %555 = vmatpush1.msra.mxu0 0.0
        %556 = vmatprep.subr.mxu0 0.0
        %557 = vmatpush1.msra.mxu0 0.0
        %558 = vmatprep.subr.mxu0 0.0
        %559 = vmatpush1.msra.mxu0 0.0
        %560 = vmatprep.subr.mxu0 0.0
        %561 = vmatpush1.msra.mxu0 0.0
        %562 = vmatprep.subr.mxu0 0.0
        %563 = vmatpush1.msra.mxu0 0.0
        %564 = vmatprep.subr.mxu0 0.0
        %565 = vmatpush1.msra.mxu0 0.0
        %566 = vmatprep.subr.mxu0 0.0
        %567 = vmatpush1.msra.mxu0 0.0
        %568 = vmatprep.mubr.f32.mxu0 0.0
        %569 = vmatmul.mubr.f32.gmra.mrb[0].mxu0 %v502
        %v570 = vpop.f32.mrb[0].mxu0
        %v571 = vadd.f32 %v498, %v570
        %v572 = vpop.f32.mrb[0].mxu0
        %573 = vdwg.mxu0
        %v574 = vld [vmem:[%s3] sm:$0x1]
        %v576 = vlaneseq
        %v577 = vshrl.u32 %v576, 7
        %v578 = vsub.s32 0, %v577
        %v579 = vrot.slane %v574, %v578
        %v581 = vadd.f32 %v571, %v579
        %v582 = vtanh.pop %v581
        %583 = vst.msk [vmem:[%s232] sm:$0xff] %vm250, %v582
        %584 = vst.msk [vmem:[%s239] sm:$0xff] %vm327, %v349
        %s585 = sand.u32 %s125, 1
        %s586 = scalar_lea.sflag [#allocation3], %s585
        %s587 = sand.u32 %s125, 1
        %s588 = smul.addr %s587, 8
        %s589 = scalar_lea.vmem [#allocation2], %s588
        %s590 = sand.u32 %s151, 1
        %s591 = scalar_lea.sflag [#allocation5], %s590
        %s592 = sand.u32 %s151, 1
        %s593 = smul.addr %s592, 8
        %s594 = scalar_lea.vmem [#allocation4], %s593
        // Predicated region
        $region37: #{tpu_custom_call.1} parent=35 // pred_check
          %p595 = pneg %p135
        $region38: #{tpu_custom_call.1} parent=35 // pred_check_branch
          %597 = sbr.rel (%p595) target = $region40
        $region39: #{tpu_custom_call.1} parent=35 // pred_region
          %s599 = ssub.s32 128, 128
          %600 = vsyncadd %s586, %s599
          %s601 = smul.addr %s23, 128
          %s602 = scalar_lea.hbm %s4, %s601
          %s604 = sshll.u32 %s589, 4
          %s605 = int_to_ptr.vmem [resolvable:$true] %s604
          %607 = dma.vmem_to_hbm [thread:$0]  %s605, 128, %s602, %s586
        $region40: #{tpu_custom_call.1} parent=35 // pred_fallthru
          _
        // Predicated region
        $region41: #{tpu_custom_call.1} parent=35 // pred_check
          %p608 = pneg %p161
        $region42: #{tpu_custom_call.1} parent=35 // pred_check_branch
          %610 = sbr.rel (%p608) target = $region44
        $region43: #{tpu_custom_call.1} parent=35 // pred_region
          %s612 = ssub.s32 128, 128
          %613 = vsyncadd %s591, %s612
          %s614 = smul.addr %s23, 128
          %s615 = scalar_lea.hbm %s5, %s614
          %s617 = sshll.u32 %s594, 4
          %s618 = int_to_ptr.vmem [resolvable:$true] %s617
          %620 = dma.vmem_to_hbm [thread:$0]  %s618, 128, %s615, %s591
        $region44: #{tpu_custom_call.1} parent=35 // pred_fallthru
          _
      $region36: #{tpu_custom_call.1} parent=5 // pred_fallthru
        _
      %p621 = scmp.le.s32.totalorder 2, %s18
      // Predicated region
      $region45: #{tpu_custom_call.1} parent=5 // pred_check
        %p622 = pneg %p621
      $region46: #{tpu_custom_call.1} parent=5 // pred_check_branch
        %624 = sbr.rel (%p622) target = $region48
      $region47: #{tpu_custom_call.1} parent=5 // pred_region
        %s625 = ssub.s32 %s18, 2
        // Predicated region
        $region49: #{tpu_custom_call.1} parent=47 // pred_check
          %p626 = pneg %p141
        $region50: #{tpu_custom_call.1} parent=47 // pred_check_branch
          %628 = sbr.rel (%p626) target = $region52
        $region51: #{tpu_custom_call.1} parent=47 // pred_region
          %s629 = sand.u32 %s126, 1
          %s630 = scalar_lea.sflag [#allocation3], %s629
          %s631 = sand.u32 %s126, 1
          %s632 = smul.addr %s631, 8
          %s633 = scalar_lea.vmem [#allocation2], %s632
          %634 = dma.done %s630, 128
        $region52: #{tpu_custom_call.1} parent=47 // pred_fallthru
          _
        // Predicated region
        $region53: #{tpu_custom_call.1} parent=47 // pred_check
          %p635 = pneg %p167
        $region54: #{tpu_custom_call.1} parent=47 // pred_check_branch
          %637 = sbr.rel (%p635) target = $region56
        $region55: #{tpu_custom_call.1} parent=47 // pred_region
          %s638 = sand.u32 %s152, 1
          %s639 = scalar_lea.sflag [#allocation5], %s638
          %s640 = sand.u32 %s152, 1
          %s641 = smul.addr %s640, 8
          %s642 = scalar_lea.vmem [#allocation4], %s641
          %643 = dma.done %s639, 128
        $region56: #{tpu_custom_call.1} parent=47 // pred_fallthru
          _
      $region48: #{tpu_custom_call.1} parent=5 // pred_fallthru
        _
    $region6: #{tpu_custom_call.1} parent=1 // loop_footer
      %s22 = sadd.s32 1, %s18
    $region7: #{tpu_custom_call.1} parent=1 // loop_footer_branch
      %17 = sbr.rel target = $region3
    $region8: #{tpu_custom_call.1} parent=1 // loop_exit
      _
    %644 = vsyncpa [#allocation3], 1
    %s645 = scalar_lea.sflag [#allocation3], 1
    %646 = vsyncpa %s645, 1
    %647 = vsyncpa [#allocation5], 1
    %s648 = scalar_lea.sflag [#allocation5], 1
    %649 = vsyncpa %s648, 1

</llo_original>
